<compile_context>
chip_gen: v5e
topology: v5e:2x2
jax: 0.10.0
libtpu: 0.0.40
codegen_flags: <defaults>
</compile_context>

<pallas_src>
import functools

import jax
import jax.numpy as jnp
from jax.experimental import pallas as pl
from jax.experimental.pallas import tpu as pltpu

_MIB = 1 << 20


# ---------------------------------------------------------------------------
# Per-generation VMEM budgets.
# ---------------------------------------------------------------------------
@functools.lru_cache(maxsize=1)
def _chip_config():
    """(vmem_capacity_bytes, num_tensorcores) with safe fallbacks."""
    kind = ""
    try:
        kind = jax.devices()[0].device_kind.lower()
    except Exception:
        kind = ""
    is_v7 = "v7" in kind
    vmem_cap = None
    try:
        vmem_cap = int(pltpu.get_tpu_info().vmem_capacity_bytes)
    except Exception:
        vmem_cap = None
    if not vmem_cap or vmem_cap <= 0:
        # v5e / v6e have 128 MiB physical VMEM per TC; v7x has 64 MiB.
        vmem_cap = (64 * _MIB) if is_v7 else (128 * _MIB)
    num_tc = 2 if is_v7 else 1
    return vmem_cap, num_tc


def _budgets():
    vmem_cap, num_tc = _chip_config()
    # Explicit scoped-VMEM limits passed to every pallas_call (never rely on the
    # small per-chip defaults).  Stay well under physical capacity.
    fused_limit = int(max(32 * _MIB, min(96 * _MIB, 0.70 * vmem_cap)))
    tiled_limit = int(max(28 * _MIB, min(80 * _MIB, 0.60 * vmem_cap)))
    big_chip = vmem_cap >= 96 * _MIB
    # Fused path residency ~ 4 * block (in + out, double-buffered) + weights.
    fused_max_block = min(16 * _MIB if big_chip else 6 * _MIB,
                          (fused_limit - 4 * _MIB) // 5)
    # Tiled path: scale kernel double-buffers in + out (~4x tile); pool kernel
    # only its input (~2x tile) so it gets a ~2x larger tile budget.
    scale_tile_budget = (tiled_limit - 4 * _MIB) // 5
    pool_tile_budget = (tiled_limit - 4 * _MIB) // 3
    return dict(fused_limit=fused_limit, tiled_limit=tiled_limit,
                fused_max_block=fused_max_block,
                scale_tile_budget=scale_tile_budget,
                pool_tile_budget=pool_tile_budget,
                num_tc=num_tc)


def _pick_hw_tile(HW, C, itemsize, budget_bytes, *, min_splits=1, override=None):
    """Lane tile: a multiple of 128, or the full HW extent (always legal)."""
    if HW <= 128:
        return HW
    if override is not None:
        return min(HW, max(128, (int(override) // 128) * 128))
    tile = HW
    if C * HW * itemsize > budget_bytes:
        lanes = (budget_bytes // max(1, C * itemsize)) // 128 * 128
        tile = max(128, int(lanes))
    if min_splits > 1:
        per_split = -(-HW // min_splits)                    # ceil(HW / splits)
        cap = max(128, -(-per_split // 128) * 128)          # ceil to 128
        tile = min(tile, cap)
    return HW if tile >= HW else tile


# ---------------------------------------------------------------------------
# Gate math (tiny; VPU only).
# ---------------------------------------------------------------------------
def _sigmoid(v):
    # exp runs on the EUP slot; the exact divide only touches the tiny gate
    # vectors, so it is kept exact.
    return 1.0 / (1.0 + jnp.exp(-v))


def _gate(pooled, w1, b1, w2, b2):
    """SE gate from the pooled channel vector.

    pooled: (C, 1) f32.   w1: (C, R), b1: (1, R), w2: (C, R), b2: (C, 1).
    Returns the sigmoid gate s of shape (C, 1) in f32.
    """
    w1f = w1.astype(jnp.float32)
    w2f = w2.astype(jnp.float32)
    # conv1x1 (C -> R) + SiLU:   h[r] = sum_c w1[c, r] * pooled[c]
    h = jnp.sum(w1f * pooled, axis=0, keepdims=True) + b1.astype(jnp.float32)  # (1, R)
    h = h * _sigmoid(h)
    # conv1x1 (R -> C) + sigmoid: s[c] = sum_r w2[c, r] * h[r]
    s = jnp.sum(w2f * h, axis=1, keepdims=True) + b2.astype(jnp.float32)       # (C, 1)
    return _sigmoid(s)


# ---------------------------------------------------------------------------
# Fused path: one (C, HW) block per image (2 HBM passes).
# ---------------------------------------------------------------------------
def _se_fused_kernel(x_ref, w1_ref, b1_ref, w2_ref, b2_ref, o_ref, *, hw_total):
    # x_ref / o_ref: (1, C, HW) -- HW on lanes (lane-dense loads and stores).
    x = x_ref[0]                                                       # (C, HW)
    # f32-accumulated lane reduction without materializing a full f32 copy.
    pooled = jnp.sum(x, axis=-1, keepdims=True, dtype=jnp.float32) * (1.0 / hw_total)
    s = _gate(pooled, w1_ref[...], b1_ref[...], w2_ref[...], b2_ref[...])
    # Scale in the native dtype; s lane-broadcasts over HW.
    o_ref[0] = x * s.astype(o_ref.dtype)


def _se_fused(x, w1, b1, w2, b2, *, vmem_limit):
    N, C, HW = x.shape
    R = w1.shape[1]
    return pl.pallas_call(
        functools.partial(_se_fused_kernel, hw_total=HW),
        out_shape=jax.ShapeDtypeStruct((N, C, HW), x.dtype),
        grid_spec=pltpu.PrefetchScalarGridSpec(
            num_scalar_prefetch=0,
            grid=(N,),
            in_specs=[
                pl.BlockSpec((1, C, HW), lambda n: (n, 0, 0)),
                pl.BlockSpec((C, R), lambda n: (0, 0)),
                pl.BlockSpec((1, R), lambda n: (0, 0)),
                pl.BlockSpec((C, R), lambda n: (0, 0)),
                pl.BlockSpec((C, 1), lambda n: (0, 0)),
            ],
            out_specs=pl.BlockSpec((1, C, HW), lambda n: (n, 0, 0)),
        ),
        compiler_params=pltpu.CompilerParams(
            dimension_semantics=("parallel",),
            vmem_limit_bytes=int(vmem_limit)),
    )(x, w1, b1, w2, b2)


# ---------------------------------------------------------------------------
# Tiled path (VMEM guard, 3 HBM passes): pool+gate kernel, then scale kernel.
# ---------------------------------------------------------------------------
def _se_pool_gate_kernel(x_ref, w1_ref, b1_ref, w2_ref, b2_ref, s_ref, acc_ref,
                         *, hw_total):
    t = pl.program_id(1)
    last = pl.num_programs(1) - 1

    @pl.when(t == 0)
    def _():
        acc_ref[...] = jnp.zeros_like(acc_ref)

    x = x_ref[0]                                   # (C, hw_tile) native dtype
    hw_tile = x.shape[-1]

    if hw_total % hw_tile != 0:
        # Only the final tile has padded (garbage) lanes; mask only there so the
        # steady-state tiles stay free of iota/cmp/select VALU filler.
        @pl.when(t != last)
        def _():
            acc_ref[...] += jnp.sum(x, axis=-1, keepdims=True, dtype=jnp.float32)

        @pl.when(t == last)
        def _():
            lane = jax.lax.broadcasted_iota(jnp.int32, x.shape, 1)
            valid = (t * hw_tile + lane) < hw_total
            xm = jnp.where(valid, x, jnp.zeros_like(x))
            acc_ref[...] += jnp.sum(xm, axis=-1, keepdims=True, dtype=jnp.float32)
    else:
        acc_ref[...] += jnp.sum(x, axis=-1, keepdims=True, dtype=jnp.float32)

    @pl.when(t == last)
    def _():
        pooled = acc_ref[...] * (1.0 / hw_total)
        s_ref[0] = _gate(pooled, w1_ref[...], b1_ref[...],
                         w2_ref[...], b2_ref[...])


def _se_scale_kernel(x_ref, s_ref, o_ref):
    # Lane-dense loads/stores; s lane-broadcasts over the HW tile; native dtype.
    o_ref[0] = x_ref[0] * s_ref[0].astype(o_ref.dtype)


def _se_tiled(x, w1, b1, w2, b2, *, pool_tile_budget, scale_tile_budget,
              vmem_limit, min_hw_splits=1, tile_lanes_override=None):
    N, C, HW = x.shape
    R = w1.shape[1]
    itemsize = jnp.dtype(x.dtype).itemsize

    # Decoupled tile sizes: pool pass (read-only) gets ~2x larger tiles.
    pool_tile = _pick_hw_tile(HW, C, itemsize, pool_tile_budget,
                              override=tile_lanes_override)
    scale_tile = _pick_hw_tile(HW, C, itemsize, scale_tile_budget,
                               min_splits=min_hw_splits,
                               override=tile_lanes_override)
    pool_tiles = pl.cdiv(HW, pool_tile)
    scale_tiles = pl.cdiv(HW, scale_tile)

    s = pl.pallas_call(
        functools.partial(_se_pool_gate_kernel, hw_total=HW),
        out_shape=jax.ShapeDtypeStruct((N, C, 1), jnp.float32),
        grid_spec=pltpu.PrefetchScalarGridSpec(
            num_scalar_prefetch=0,
            grid=(N, pool_tiles),
            in_specs=[
                pl.BlockSpec((1, C, pool_tile), lambda n, t: (n, 0, t)),
                pl.BlockSpec((C, R), lambda n, t: (0, 0)),
                pl.BlockSpec((1, R), lambda n, t: (0, 0)),
                pl.BlockSpec((C, R), lambda n, t: (0, 0)),
                pl.BlockSpec((C, 1), lambda n, t: (0, 0)),
            ],
            out_specs=pl.BlockSpec((1, C, 1), lambda n, t: (n, 0, 0)),
            scratch_shapes=[pltpu.VMEM((C, 1), jnp.float32)],
        ),
        compiler_params=pltpu.CompilerParams(
            dimension_semantics=("parallel", "arbitrary"),
            vmem_limit_bytes=int(vmem_limit)),
    )(x, w1, b1, w2, b2)

    out = pl.pallas_call(
        _se_scale_kernel,
        out_shape=jax.ShapeDtypeStruct((N, C, HW), x.dtype),
        grid_spec=pltpu.PrefetchScalarGridSpec(
            num_scalar_prefetch=0,
            grid=(N, scale_tiles),
            in_specs=[
                pl.BlockSpec((1, C, scale_tile), lambda n, t: (n, 0, t)),
                pl.BlockSpec((1, C, 1), lambda n, t: (n, 0, 0)),
            ],
            out_specs=pl.BlockSpec((1, C, scale_tile), lambda n, t: (n, 0, t)),
        ),
        compiler_params=pltpu.CompilerParams(
            dimension_semantics=("parallel", "parallel"),
            vmem_limit_bytes=int(vmem_limit)),
    )(x, s)
    return out


# ---------------------------------------------------------------------------
# Wrapper (PyTorch-convention parameters).
# ---------------------------------------------------------------------------
def squeeze_excitation(x_nchw, w1, b1, w2, b2, *, force_tiled=False,
                       _tile_lanes_override=None):
    """SE forward.

    x_nchw: (N, C, H, W)
    w1: (R, C)  -- Conv2d(C, R, 1) weight squeezed    b1: (R,)
    w2: (C, R)  -- Conv2d(R, C, 1) weight squeezed    b2: (C,)
    Returns (N, C, H, W) in the input dtype.
    """
    N, C, H, W = x_nchw.shape
    R = w1.shape[0]
    HW = H * W

    # Free reshape: NCHW is contiguous as (N, C, HW). No transposes.
    x = x_nchw.reshape(N, C, HW)
    w1_cr = jnp.transpose(w1)        # (C, R) -- tiny
    w2_cr = w2                       # (C, R) already
    b1_2d = b1.reshape(1, R)
    b2_2d = b2.reshape(C, 1)

    cfg = _budgets()
    itemsize = jnp.dtype(x_nchw.dtype).itemsize
    block_bytes = C * HW * itemsize

    use_fused = (not force_tiled) and block_bytes <= cfg["fused_max_block"]
    min_hw_splits = 1
    if use_fused and cfg["num_tc"] > 1 and N < cfg["num_tc"]:
        # v7x with batch smaller than the core count: the fused grid=(N,) can
        # only use one TensorCore.  For large-enough images prefer the tiled
        # path with >=2 HW tiles so the HBM-bound scale pass shards over both.
        if block_bytes * N >= 2 * _MIB and HW >= 256:
            use_fused = False
            min_hw_splits = cfg["num_tc"]

    if use_fused:
        out = _se_fused(x, w1_cr, b1_2d, w2_cr, b2_2d,
                        vmem_limit=cfg["fused_limit"])
    else:
        out = _se_tiled(x, w1_cr, b1_2d, w2_cr, b2_2d,
                        pool_tile_budget=cfg["pool_tile_budget"],
                        scale_tile_budget=cfg["scale_tile_budget"],
                        vmem_limit=cfg["tiled_limit"],
                        min_hw_splits=min_hw_splits,
                        tile_lanes_override=_tile_lanes_override)

    return out.reshape(N, C, H, W)


def _reference(x_nchw, w1, b1, w2, b2):
    pooled = jnp.mean(x_nchw, axis=(2, 3))          # (N, C)
    h = pooled @ w1.T + b1                          # (N, R)
    h = h * jax.nn.sigmoid(h)                       # SiLU
    s = jax.nn.sigmoid(h @ w2.T + b2)               # (N, C)
    return x_nchw * s[:, :, None, None]


if __name__ == "__main__":
    # Small shapes consistent with the nn.Module.
    N, C, H, W = 2, 4, 16, 16
    R = 2  # reduce_dim

    key = jax.random.PRNGKey(0)
    kx, k1, kb1, k2, kb2, kx2 = jax.random.split(key, 6)

    x = jax.random.normal(kx, (N, C, H, W), dtype=jnp.float32)
    # PyTorch Conv2d(C, R, 1) weight is (R, C, 1, 1); store it squeezed as (R, C).
    w1 = jax.random.normal(k1, (R, C), dtype=jnp.float32) * 0.5
    b1 = jax.random.normal(kb1, (R,), dtype=jnp.float32) * 0.1
    w2 = jax.random.normal(k2, (C, R), dtype=jnp.float32) * 0.5
    b2 = jax.random.normal(kb2, (C,), dtype=jnp.float32) * 0.1

    y_ref = _reference(x, w1, b1, w2, b2)

    # Fused path (what these shapes use in practice).
    y = squeeze_excitation(x, w1, b1, w2, b2)
    jax.block_until_ready(y)
    assert y.shape == x.shape
    assert jnp.allclose(y, y_ref, atol=1e-5, rtol=1e-5), "fused mismatch vs reference"

    # Tiled VMEM-guard path (forced, single tile per image).
    y_t = squeeze_excitation(x, w1, b1, w2, b2, force_tiled=True)
    jax.block_until_ready(y_t)
    assert jnp.allclose(y_t, y_ref, atol=1e-5, rtol=1e-5), "tiled mismatch vs reference"

    # Tiled path with multiple HW tiles and a partial (masked) last tile:
    # H=W=20 -> HW=400 = 3*128 + 16 with a forced 128-lane tile.
    H2 = W2 = 20
    x2 = jax.random.normal(kx2, (N, C, H2, W2), dtype=jnp.float32)
    y2_ref = _reference(x2, w1, b1, w2, b2)
    y2 = squeeze_excitation(x2, w1, b1, w2, b2, force_tiled=True,
                            _tile_lanes_override=128)
    jax.block_until_ready(y2)
    assert jnp.allclose(y2, y2_ref, atol=1e-5, rtol=1e-5), "partial-tile mismatch"

    print("KERNEL_OK")
</pallas_src>

<mosaic_0001>
module attributes {stable_mosaic.version = 11 : i64} {
  func.func @_se_fused_kernel(%arg0: i32, %arg1: memref<1x4x256xf32, #tpu.memory_space<vmem>>, %arg2: memref<4x2xf32, #tpu.memory_space<vmem>>, %arg3: memref<1x2xf32, #tpu.memory_space<vmem>>, %arg4: memref<4x2xf32, #tpu.memory_space<vmem>>, %arg5: memref<4x1xf32, #tpu.memory_space<vmem>>, %arg6: memref<1x4x256xf32, #tpu.memory_space<vmem>>) attributes {dimension_semantics = [#tpu.dimension_semantics<parallel>], iteration_bounds = array<i64: 2>, scalar_prefetch = 0 : i64, scratch_operands = 0 : i64, tpu.core_type = #tpu.core_type<tc>, window_params = [{transform_indices = @transform_0, window_bounds = array<i64: 1, 4, 256>}, {pipeline_mode = #tpu.pipeline_mode<synchronous>, transform_indices = @transform_1, window_bounds = array<i64: 4, 2>}, {pipeline_mode = #tpu.pipeline_mode<synchronous>, transform_indices = @transform_2, window_bounds = array<i64: 1, 2>}, {pipeline_mode = #tpu.pipeline_mode<synchronous>, transform_indices = @transform_3, window_bounds = array<i64: 4, 2>}, {pipeline_mode = #tpu.pipeline_mode<synchronous>, transform_indices = @transform_4, window_bounds = array<i64: 4, 1>}, {transform_indices = @transform_5, window_bounds = array<i64: 1, 4, 256>}]} {
    %c0 = arith.constant 0 : index
    %c0_0 = arith.constant 0 : index
    %c0_1 = arith.constant 0 : index
    %0 = vector.load %arg1[%c0, %c0_0, %c0_1] : memref<1x4x256xf32, #tpu.memory_space<vmem>>, vector<1x4x256xf32>
    %1 = vector.shape_cast %0 : vector<1x4x256xf32> to vector<4x256xf32>
    %cst = arith.constant dense<0.000000e+00> : vector<4xf32>
    %2 = vector.multi_reduction <add>, %1, %cst [1] : vector<4x256xf32> to vector<4xf32>
    %3 = vector.shape_cast %2 : vector<4xf32> to vector<4x1xf32>
    %cst_2 = arith.constant 3.906250e-03 : f32
    %4 = vector.broadcast %cst_2 : f32 to vector<4x1xf32>
    %5 = arith.mulf %3, %4 : vector<4x1xf32>
    %c0_3 = arith.constant 0 : index
    %c0_4 = arith.constant 0 : index
    %6 = vector.load %arg2[%c0_3, %c0_4] : memref<4x2xf32, #tpu.memory_space<vmem>>, vector<4x2xf32>
    %c0_5 = arith.constant 0 : index
    %c0_6 = arith.constant 0 : index
    %7 = vector.load %arg3[%c0_5, %c0_6] : memref<1x2xf32, #tpu.memory_space<vmem>>, vector<1x2xf32>
    %c0_7 = arith.constant 0 : index
    %c0_8 = arith.constant 0 : index
    %8 = vector.load %arg4[%c0_7, %c0_8] : memref<4x2xf32, #tpu.memory_space<vmem>>, vector<4x2xf32>
    %c0_9 = arith.constant 0 : index
    %c0_10 = arith.constant 0 : index
    %9 = vector.load %arg5[%c0_9, %c0_10] : memref<4x1xf32, #tpu.memory_space<vmem>>, vector<4x1xf32>
    %10 = vector.broadcast %5 : vector<4x1xf32> to vector<4x2xf32>
    %11 = arith.mulf %6, %10 : vector<4x2xf32>
    %cst_11 = arith.constant dense<0.000000e+00> : vector<2xf32>
    %12 = vector.multi_reduction <add>, %11, %cst_11 [0] : vector<4x2xf32> to vector<2xf32>
    %13 = vector.shape_cast %12 : vector<2xf32> to vector<1x2xf32>
    %14 = arith.addf %13, %7 : vector<1x2xf32>
    %cst_12 = arith.constant 0.000000e+00 : f32
    %15 = vector.broadcast %cst_12 : f32 to vector<1x2xf32>
    %16 = arith.subf %15, %14 : vector<1x2xf32>
    %17 = math.exp %16 : vector<1x2xf32>
    %cst_13 = arith.constant 1.000000e+00 : f32
    %18 = vector.broadcast %cst_13 : f32 to vector<1x2xf32>
    %19 = arith.addf %18, %17 : vector<1x2xf32>
    %cst_14 = arith.constant 1.000000e+00 : f32
    %20 = vector.broadcast %cst_14 : f32 to vector<1x2xf32>
    %21 = arith.divf %20, %19 : vector<1x2xf32>
    %22 = arith.mulf %14, %21 : vector<1x2xf32>
    %23 = vector.broadcast %22 : vector<1x2xf32> to vector<4x2xf32>
    %24 = arith.mulf %8, %23 : vector<4x2xf32>
    %cst_15 = arith.constant dense<0.000000e+00> : vector<4xf32>
    %25 = vector.multi_reduction <add>, %24, %cst_15 [1] : vector<4x2xf32> to vector<4xf32>
    %26 = vector.shape_cast %25 : vector<4xf32> to vector<4x1xf32>
    %27 = arith.addf %26, %9 : vector<4x1xf32>
    %cst_16 = arith.constant 0.000000e+00 : f32
    %28 = vector.broadcast %cst_16 : f32 to vector<4x1xf32>
    %29 = arith.subf %28, %27 : vector<4x1xf32>
    %30 = math.exp %29 : vector<4x1xf32>
    %cst_17 = arith.constant 1.000000e+00 : f32
    %31 = vector.broadcast %cst_17 : f32 to vector<4x1xf32>
    %32 = arith.addf %31, %30 : vector<4x1xf32>
    %cst_18 = arith.constant 1.000000e+00 : f32
    %33 = vector.broadcast %cst_18 : f32 to vector<4x1xf32>
    %34 = arith.divf %33, %32 : vector<4x1xf32>
    %35 = vector.broadcast %34 : vector<4x1xf32> to vector<4x256xf32>
    %36 = arith.mulf %1, %35 : vector<4x256xf32>
    %c0_19 = arith.constant 0 : index
    %c0_20 = arith.constant 0 : index
    %c0_21 = arith.constant 0 : index
    %37 = vector.load %arg6[%c0_19, %c0_20, %c0_21] : memref<1x4x256xf32, #tpu.memory_space<vmem>>, vector<1x4x256xf32>
    %38 = vector.shape_cast %37 : vector<1x4x256xf32> to vector<4x256xf32>
    %39 = vector.shape_cast %36 : vector<4x256xf32> to vector<1x4x256xf32>
    tpu.vector_store %arg6[%c0_19, %c0_20, %c0_21], %39 {strides = array<i32>} : memref<1x4x256xf32, #tpu.memory_space<vmem>>, vector<1x4x256xf32>,
    return
  }
  func.func @transform_0(%arg0: i32) -> (i32, i32, i32) {
    %c0_i32 = arith.constant 0 : i32
    %c0_i32_0 = arith.constant 0 : i32
    %c0_i32_1 = arith.constant 0 : i32
    return %arg0, %c0_i32, %c0_i32_0 : i32, i32, i32
  }
  func.func @transform_1(%arg0: i32) -> (i32, i32) {
    %c0_i32 = arith.constant 0 : i32
    %c0_i32_0 = arith.constant 0 : i32
    %c0_i32_1 = arith.constant 0 : i32
    return %c0_i32, %c0_i32_0 : i32, i32
  }
  func.func @transform_2(%arg0: i32) -> (i32, i32) {
    %c0_i32 = arith.constant 0 : i32
    %c0_i32_0 = arith.constant 0 : i32
    %c0_i32_1 = arith.constant 0 : i32
    return %c0_i32, %c0_i32_0 : i32, i32
  }
  func.func @transform_3(%arg0: i32) -> (i32, i32) {
    %c0_i32 = arith.constant 0 : i32
    %c0_i32_0 = arith.constant 0 : i32
    %c0_i32_1 = arith.constant 0 : i32
    return %c0_i32, %c0_i32_0 : i32, i32
  }
  func.func @transform_4(%arg0: i32) -> (i32, i32) {
    %c0_i32 = arith.constant 0 : i32
    %c0_i32_0 = arith.constant 0 : i32
    %c0_i32_1 = arith.constant 0 : i32
    return %c0_i32, %c0_i32_0 : i32, i32
  }
  func.func @transform_5(%arg0: i32) -> (i32, i32, i32) {
    %c0_i32 = arith.constant 0 : i32
    %c0_i32_0 = arith.constant 0 : i32
    %c0_i32_1 = arith.constant 0 : i32
    return %arg0, %c0_i32, %c0_i32_0 : i32, i32, i32
  }
}

</mosaic_0001>

<llo_original>
// kernel: tpu_custom_call.1
$region0: #{tpu_custom_call.1}
  #allocation0 [shape = 'u32[]', space=smem, size = 0x4, offset = 0x4, fixed_abs, tag = 'smem constant byte address 0x4 - core index']
  #allocation1 [shape = 'u32[72,128]{1,0:T(1,128)}', space=vmem, size = 0x9000, scoped, tag = 'internal scratch']
  %s0 = inlined_call_operand.hbm [shape: f32[2,4,256], index: 0, kind: input, shape index: {}]
  %s1 = inlined_call_operand.vmem [shape: f32[4,2], index: 1, kind: input, shape index: {}]
  %s2 = inlined_call_operand.vmem [shape: f32[1,2], index: 2, kind: input, shape index: {}]
  %s3 = inlined_call_operand.vmem [shape: f32[4,2], index: 3, kind: input, shape index: {}]
  %s4 = inlined_call_operand.vmem [shape: f32[4,1], index: 4, kind: input, shape index: {}]
  %s5 = inlined_call_operand.hbm [shape: f32[2,4,256], index: 5, kind: output, shape index: {}]
  %s6 = sld [smem:[#allocation0]]
  $region57: #{tpu_custom_call.1} parent=0
    _
  %s8 = ssub.s32 1, %s6
  %s9 = scalar_select 0, %s8, %s6
  $region1: #{tpu_custom_call.1} parent=0
    #allocation2 [shape = 'u8[8192]{0}', space=vmem, size = 0x2000, scoped, tag = 'input window, operand 0']
    #allocation3 [shape = 's32[2]{0}', space=sflag, size = 0x8, scoped, tag = 'scoped memory for tpu_custom_call.1']
    #allocation4 [shape = 's32[2]{0}', space=sflag, size = 0x8, scoped, tag = 'scoped memory for tpu_custom_call.1']
    #allocation5 [shape = 'u8[8192]{0}', space=vmem, size = 0x2000, scoped, tag = 'output window, operand 0']
    %10 = vsyncpa [#allocation3], 0
    %s11 = scalar_lea.sflag [#allocation3], 1
    %12 = vsyncpa %s11, 0
    %13 = vsyncpa [#allocation4], 0
    %s14 = scalar_lea.sflag [#allocation4], 1
    %15 = vsyncpa %s14, 0
    loop: start=0, step=1, limit=4
    $region2: #{tpu_custom_call.1} parent=1 // loop_pre_header
      _
    $region3: #{tpu_custom_call.1} parent=1 // loop_header
      %s17 = sphi 0, %s21
      %p18 = scmp.ge.s32.totalorder %s17, 4
      %s27 = sphi 0, %s29
      %s30 = sphi 0, %s27
      %s31 = sphi 0, %s30
      %s47 = sphi 0, %s31
      %s51 = sphi 0, %s51
      %s53 = sphi 0, %s51
      %s54 = sphi 0, %s53
      %s68 = sphi 0, %s54
      %s72 = sphi 0, %s72
      %s74 = sphi 0, %s72
      %s75 = sphi 0, %s74
      %s89 = sphi 0, %s75
      %s93 = sphi 0, %s93
      %s95 = sphi 0, %s93
      %s96 = sphi 0, %s95
      %s110 = sphi 0, %s96
      %s114 = sphi 0, %s114
      %s116 = sphi 0, %s114
      %s117 = sphi 0, %s116
      %s131 = sphi 0, %s117
      %s137 = sphi 0, %s139
      %s140 = sphi 0, %s137
      %s141 = sphi 0, %s140
      %s157 = sphi 0, %s141
    $region4: #{tpu_custom_call.1} parent=1 // loop_header_branch
      %20 = sbr.rel (%p18) target = $region8
    $region5: #{tpu_custom_call.1} parent=1 // loop_body
      %s22 = ssub.s32 %s17, 1
      %s23 = ssub.s32 %s17, 2
      %s24 = sadd.s32 %s17, 1
      %s25 = ssub.s32 %s17, %s24
      %p26 = scmp.eq.s32.totalorder %s25, 0
      %s28 = sadd.s32 %s27, 1
      %s29 = scalar_select %p26, %s27, %s28
      %p32 = pneg %p26
      %p33 = scmp.eq.s32.totalorder %s17, 1
      %p34 = por %p32, %p33
      %p35 = scmp.ne.s32.totalorder %s27, %s30
      %p36 = scmp.eq.s32.totalorder %s17, 0
      %p37 = por %p35, %p36
      %p38 = scmp.ne.s32.totalorder %s27, %s30
      %p39 = scmp.eq.s32.totalorder %s22, 1
      %p40 = por %p38, %p39
      %p41 = scmp.ne.s32.totalorder %s30, %s31
      %p42 = scmp.eq.s32.totalorder %s22, 0
      %p43 = por %p41, %p42
      %p44 = scmp.ne.s32.totalorder %s30, %s31
      %p45 = scmp.eq.s32.totalorder %s23, 1
      %p46 = por %p44, %p45
      %p48 = scmp.ne.s32.totalorder %s31, %s47
      %p49 = scmp.eq.s32.totalorder %s23, 0
      %p50 = por %p48, %p49
      %s52 = sadd.s32 %s51, 1
      %p55 = scmp.eq.s32.totalorder %s17, 1
      %p56 = scmp.ne.s32.totalorder %s51, %s53
      %p57 = scmp.eq.s32.totalorder %s17, 0
      %p58 = por %p56, %p57
      %p59 = scmp.ne.s32.totalorder %s51, %s53
      %p60 = scmp.eq.s32.totalorder %s22, 1
      %p61 = por %p59, %p60
      %p62 = scmp.ne.s32.totalorder %s53, %s54
      %p63 = scmp.eq.s32.totalorder %s22, 0
      %p64 = por %p62, %p63
      %p65 = scmp.ne.s32.totalorder %s53, %s54
      %p66 = scmp.eq.s32.totalorder %s23, 1
      %p67 = por %p65, %p66
      %p69 = scmp.ne.s32.totalorder %s54, %s68
      %p70 = scmp.eq.s32.totalorder %s23, 0
      %p71 = por %p69, %p70
      %s73 = sadd.s32 %s72, 1
      %p76 = scmp.eq.s32.totalorder %s17, 1
      %p77 = scmp.ne.s32.totalorder %s72, %s74
      %p78 = scmp.eq.s32.totalorder %s17, 0
      %p79 = por %p77, %p78
      %p80 = scmp.ne.s32.totalorder %s72, %s74
      %p81 = scmp.eq.s32.totalorder %s22, 1
      %p82 = por %p80, %p81
      %p83 = scmp.ne.s32.totalorder %s74, %s75
      %p84 = scmp.eq.s32.totalorder %s22, 0
      %p85 = por %p83, %p84
      %p86 = scmp.ne.s32.totalorder %s74, %s75
      %p87 = scmp.eq.s32.totalorder %s23, 1
      %p88 = por %p86, %p87
      %p90 = scmp.ne.s32.totalorder %s75, %s89
      %p91 = scmp.eq.s32.totalorder %s23, 0
      %p92 = por %p90, %p91
      %s94 = sadd.s32 %s93, 1
      %p97 = scmp.eq.s32.totalorder %s17, 1
      %p98 = scmp.ne.s32.totalorder %s93, %s95
      %p99 = scmp.eq.s32.totalorder %s17, 0
      %p100 = por %p98, %p99
      %p101 = scmp.ne.s32.totalorder %s93, %s95
      %p102 = scmp.eq.s32.totalorder %s22, 1
      %p103 = por %p101, %p102
      %p104 = scmp.ne.s32.totalorder %s95, %s96
      %p105 = scmp.eq.s32.totalorder %s22, 0
      %p106 = por %p104, %p105
      %p107 = scmp.ne.s32.totalorder %s95, %s96
      %p108 = scmp.eq.s32.totalorder %s23, 1
      %p109 = por %p107, %p108
      %p111 = scmp.ne.s32.totalorder %s96, %s110
      %p112 = scmp.eq.s32.totalorder %s23, 0
      %p113 = por %p111, %p112
      %s115 = sadd.s32 %s114, 1
      %p118 = scmp.eq.s32.totalorder %s17, 1
      %p119 = scmp.ne.s32.totalorder %s114, %s116
      %p120 = scmp.eq.s32.totalorder %s17, 0
      %p121 = por %p119, %p120
      %p122 = scmp.ne.s32.totalorder %s114, %s116
      %p123 = scmp.eq.s32.totalorder %s22, 1
      %p124 = por %p122, %p123
      %p125 = scmp.ne.s32.totalorder %s116, %s117
      %p126 = scmp.eq.s32.totalorder %s22, 0
      %p127 = por %p125, %p126
      %p128 = scmp.ne.s32.totalorder %s116, %s117
      %p129 = scmp.eq.s32.totalorder %s23, 1
      %p130 = por %p128, %p129
      %p132 = scmp.ne.s32.totalorder %s117, %s131
      %p133 = scmp.eq.s32.totalorder %s23, 0
      %p134 = por %p132, %p133
      %s135 = ssub.s32 %s17, %s24
      %p136 = scmp.eq.s32.totalorder %s135, 0
      %s138 = sadd.s32 %s137, 1
      %s139 = scalar_select %p136, %s137, %s138
      %p142 = pneg %p136
      %p143 = scmp.eq.s32.totalorder %s17, 1
      %p144 = por %p142, %p143
      %p145 = scmp.ne.s32.totalorder %s137, %s140
      %p146 = scmp.eq.s32.totalorder %s17, 0
      %p147 = por %p145, %p146
      %p148 = scmp.ne.s32.totalorder %s137, %s140
      %p149 = scmp.eq.s32.totalorder %s22, 1
      %p150 = por %p148, %p149
      %p151 = scmp.ne.s32.totalorder %s140, %s141
      %p152 = scmp.eq.s32.totalorder %s22, 0
      %p153 = por %p151, %p152
      %p154 = scmp.ne.s32.totalorder %s140, %s141
      %p155 = scmp.eq.s32.totalorder %s23, 1
      %p156 = por %p154, %p155
      %p158 = scmp.ne.s32.totalorder %s141, %s157
      %p159 = scmp.eq.s32.totalorder %s23, 0
      %p160 = por %p158, %p159
      %p161 = scmp.le.s32.totalorder 1, %s17
      %p162 = scmp.lt.s32.totalorder %s17, 3
      %p163 = pnand %p161, %p162
      %p164 = pneg %p163
      // Predicated region
      $region9: #{tpu_custom_call.1} parent=5 // pred_check
        _
      $region10: #{tpu_custom_call.1} parent=5 // pred_check_branch
        %166 = sbr.rel (%p163) target = $region12
      $region11: #{tpu_custom_call.1} parent=5 // pred_region
        %s167 = ssub.s32 %s17, 1
        // Predicated region
        $region13: #{tpu_custom_call.1} parent=11 // pred_check
          %p168 = pneg %p64
        $region14: #{tpu_custom_call.1} parent=11 // pred_check_branch
          %170 = sbr.rel (%p168) target = $region16
        $region15: #{tpu_custom_call.1} parent=11 // pred_region
          _
        $region16: #{tpu_custom_call.1} parent=11 // pred_fallthru
          _
        // Predicated region
        $region17: #{tpu_custom_call.1} parent=11 // pred_check
          %p171 = pneg %p85
        $region18: #{tpu_custom_call.1} parent=11 // pred_check_branch
          %173 = sbr.rel (%p171) target = $region20
        $region19: #{tpu_custom_call.1} parent=11 // pred_region
          _
        $region20: #{tpu_custom_call.1} parent=11 // pred_fallthru
          _
        // Predicated region
        $region21: #{tpu_custom_call.1} parent=11 // pred_check
          %p174 = pneg %p106
        $region22: #{tpu_custom_call.1} parent=11 // pred_check_branch
          %176 = sbr.rel (%p174) target = $region24
        $region23: #{tpu_custom_call.1} parent=11 // pred_region
          _
        $region24: #{tpu_custom_call.1} parent=11 // pred_fallthru
          _
        // Predicated region
        $region25: #{tpu_custom_call.1} parent=11 // pred_check
          %p177 = pneg %p127
        $region26: #{tpu_custom_call.1} parent=11 // pred_check_branch
          %179 = sbr.rel (%p177) target = $region28
        $region27: #{tpu_custom_call.1} parent=11 // pred_region
          _
        $region28: #{tpu_custom_call.1} parent=11 // pred_fallthru
          _
      $region12: #{tpu_custom_call.1} parent=5 // pred_fallthru
        _
      %p180 = scmp.lt.s32.totalorder %s17, 2
      // Predicated region
      $region29: #{tpu_custom_call.1} parent=5 // pred_check
        %p181 = pneg %p180
      $region30: #{tpu_custom_call.1} parent=5 // pred_check_branch
        %183 = sbr.rel (%p181) target = $region32
      $region31: #{tpu_custom_call.1} parent=5 // pred_region
        // Predicated region
        $region33: #{tpu_custom_call.1} parent=31 // pred_check
          %p184 = pneg %p37
        $region34: #{tpu_custom_call.1} parent=31 // pred_check_branch
          %186 = sbr.rel (%p184) target = $region36
        $region35: #{tpu_custom_call.1} parent=31 // pred_region
          %s187 = sand.u32 %s27, 1
          %s188 = scalar_lea.sflag [#allocation3], %s187
          %s189 = sand.u32 %s27, 1
          %s190 = smul.addr %s189, 8
          %s191 = scalar_lea.vmem [#allocation2], %s190
          %193 = vsyncadd %s188, 0
          %s194 = smul.addr %s17, 2
          %s195 = smul.addr %s194, 4
          %s196 = scalar_lea.hbm %s0, %s195
          %s198 = sshll.u32 %s196, 4
          %s199 = int_to_ptr.hbm [resolvable:$true] %s198
          %s200 = sshll.u32 %s191, 4
          %s201 = int_to_ptr.vmem [resolvable:$true] %s200
          %203 = dma.hbm_to_vmem [thread:$0]  %s199, 128, %s201, %s188
        $region36: #{tpu_custom_call.1} parent=31 // pred_fallthru
          _
      $region32: #{tpu_custom_call.1} parent=5 // pred_fallthru
        _
      %p204 = scmp.le.s32.totalorder 1, %s17
      %p205 = scmp.lt.s32.totalorder %s17, 3
      %p206 = pnand %p204, %p205
      %p207 = pneg %p206
      // Predicated region
      $region37: #{tpu_custom_call.1} parent=5 // pred_check
        _
      $region38: #{tpu_custom_call.1} parent=5 // pred_check_branch
        %209 = sbr.rel (%p206) target = $region40
      $region39: #{tpu_custom_call.1} parent=5 // pred_region
        %s210 = ssub.s32 %s17, 1
        %s211 = sand.u32 %s30, 1
        %s212 = scalar_lea.sflag [#allocation3], %s211
        %s213 = sand.u32 %s30, 1
        %s214 = smul.addr %s213, 8
        %s215 = scalar_lea.vmem [#allocation2], %s214
        // Predicated region
        $region41: #{tpu_custom_call.1} parent=39 // pred_check
          %p216 = pneg %p43
        $region42: #{tpu_custom_call.1} parent=39 // pred_check_branch
          %218 = sbr.rel (%p216) target = $region44
        $region43: #{tpu_custom_call.1} parent=39 // pred_region
          %220 = dma.done %s212, 128
        $region44: #{tpu_custom_call.1} parent=39 // pred_fallthru
          _
        %s221 = sand.u32 %s30, 1
        %s222 = scalar_lea.sflag [#allocation3], %s221
        %s223 = sand.u32 %s30, 1
        %s224 = smul.addr %s223, 8
        %s225 = scalar_lea.vmem [#allocation2], %s224
        %p226 = pneg %p43
        %p227 = pneg %p40
        %p228 = pneg %p64
        %p229 = pneg %p61
        %p230 = pneg %p85
        %p231 = pneg %p82
        %p232 = pneg %p106
        %p233 = pneg %p103
        %p234 = pneg %p127
        %p235 = pneg %p124
        %p236 = pneg %p153
        %p237 = pneg %p150
        %s238 = sand.u32 %s140, 1
        %s239 = scalar_lea.sflag [#allocation4], %s238
        %s240 = sand.u32 %s140, 1
        %s241 = smul.addr %s240, 8
        %s242 = scalar_lea.vmem [#allocation5], %s241
        %v243 = vld [vmem:[%s215] sm:$0xff]
        %245 = vst [vmem:[#allocation1] ss:$2 sm:$0xff] %v243
        %v246 = vld.sshfl [vmem:[#allocation1] sm:$0xff pattern:$0x75316420]
        %v247 = vld.sshfl [vmem:[#allocation1 + $0x8] sm:$0xff pattern:$0x75316420]
        %vm250 = vcmask 1043456
        %v251 = vsel %vm250, %v246, 0.0
        %v252 = vsel %vm250, %v247, 0.0
        %v253 = vadd.f32 %v251, %v252
        %254 = vadd.xlane.f32.xlu0 %v253
        %v255 = vpop.xlane.xlu0 %254
        %v256 = vmul.f32 %v255, 0.00390625
        %v257 = vld [vmem:[%s1] sm:$0xf]
        %v258 = vld [vmem:[%s2] sm:$0x1]
        %v259 = vld [vmem:[%s3] sm:$0xf]
        %v260 = vld [vmem:[%s4] sm:$0xf]
        %v261 = vmul.f32 %v257, %v256
        %vm262 = vcmask 11264
        %v263 = vsel %vm262, %v261, 0.0
        %v264 = vrot.slane %v263, 4
        %v265 = vadd.f32 %v263, %v264
        %v266 = vrot.slane %v265, 2
        %v267 = vadd.f32 %v265, %v266
        %v268 = vrot.slane %v267, 1
        %v269 = vadd.f32 %v267, %v268
        %v270 = vadd.f32 %v269, %v258
        %v271 = vsub.f32 0.0, %v270
        %v272 = vmul.f32 %v271, 1.442695
        %v273 = vpow.pop %v272
        %v274 = vadd.f32 %v273, 1.0
        %v275 = vrcp.pop %v274
        %v276 = vmul.f32 %v274, %v275
        %v277 = vsub.f32 1.0, %v276
        %v278 = vmul.f32 %v275, %v277
        %v279 = vadd.f32 %v275, %v278
        %vm280 = vweird.f32 %v274
        %vm281 = vweird.f32 %v275
        %vm282 = vmor %vm280, %vm281
        %v283 = vsel %vm282, %v275, %v279
        %v284 = vand.u32 2147483647, %v274
        %vm285 = vcmp.eq.f32.partialorder %v284, 8.507059e+37
        %v286 = vand.u32 %v274, 2147483648
        %v287 = vor.u32 1.1754944e-38, %v286
        %v288 = vsel %vm285, %v287, %v283
        %v289 = vmul.f32 1.0, %v288
        %v290 = vmul.f32 %v270, %v289
        %v291 = vperm.slane %v290, 0
        %v292 = vmul.f32 %v259, %v291
        %v293 = vsel %vm262, %v292, 0.0
        %294 = vadd.xlane.f32.xlu0 %v293
        %v295 = vpop.xlane.xlu0 %294
        %v296 = vadd.f32 %v295, %v260
        %v297 = vsub.f32 0.0, %v296
        %v298 = vmul.f32 %v297, 1.442695
        %v299 = vpow.pop %v298
        %v300 = vadd.f32 %v299, 1.0
        %v301 = vrcp.pop %v300
        %v302 = vmul.f32 %v300, %v301
        %v303 = vsub.f32 1.0, %v302
        %v304 = vmul.f32 %v301, %v303
        %v305 = vadd.f32 %v301, %v304
        %vm306 = vweird.f32 %v300
        %vm307 = vweird.f32 %v301
        %vm308 = vmor %vm306, %vm307
        %v309 = vsel %vm308, %v301, %v305
        %v310 = vand.u32 2147483647, %v300
        %vm311 = vcmp.eq.f32.partialorder %v310, 8.507059e+37
        %v312 = vand.u32 %v300, 2147483648
        %v313 = vor.u32 1.1754944e-38, %v312
        %v314 = vsel %vm311, %v313, %v309
        %v315 = vmul.f32 1.0, %v314
        %317 = vset.pattern.permute.xlu0 0
        %318 = vperm.xlu0 %317, %v315
        %v319 = vpop.permute.xlu0 %318
        %v321 = vunpack.c.l.s4 839922192
        %v322 = vunpack.c.0.s8 %v321
        %v323 = vperm.slane %v319, %v322
        %v325 = vmul.f32 %v243, %v323
        %326 = vst [vmem:[%s242] sm:$0xff] %v325
        %s327 = sand.u32 %s140, 1
        %s328 = scalar_lea.sflag [#allocation4], %s327
        %s329 = sand.u32 %s140, 1
        %s330 = smul.addr %s329, 8
        %s331 = scalar_lea.vmem [#allocation5], %s330
        // Predicated region
        $region45: #{tpu_custom_call.1} parent=39 // pred_check
          %p332 = pneg %p150
        $region46: #{tpu_custom_call.1} parent=39 // pred_check_branch
          %334 = sbr.rel (%p332) target = $region48
        $region47: #{tpu_custom_call.1} parent=39 // pred_region
          %336 = vsyncadd %s328, 0
          %s337 = smul.addr %s22, 2
          %s338 = smul.addr %s337, 4
          %s339 = scalar_lea.hbm %s5, %s338
          %s341 = sshll.u32 %s331, 4
          %s342 = int_to_ptr.vmem [resolvable:$true] %s341
          %s343 = sshll.u32 %s339, 4
          %s344 = int_to_ptr.hbm [resolvable:$true] %s343
          %346 = dma.vmem_to_hbm [thread:$0]  %s342, 128, %s344, %s328
        $region48: #{tpu_custom_call.1} parent=39 // pred_fallthru
          _
      $region40: #{tpu_custom_call.1} parent=5 // pred_fallthru
        _
      %p347 = scmp.le.s32.totalorder 2, %s17
      // Predicated region
      $region49: #{tpu_custom_call.1} parent=5 // pred_check
        %p348 = pneg %p347
      $region50: #{tpu_custom_call.1} parent=5 // pred_check_branch
        %350 = sbr.rel (%p348) target = $region52
      $region51: #{tpu_custom_call.1} parent=5 // pred_region
        %s351 = ssub.s32 %s17, 2
        // Predicated region
        $region53: #{tpu_custom_call.1} parent=51 // pred_check
          %p352 = pneg %p156
        $region54: #{tpu_custom_call.1} parent=51 // pred_check_branch
          %354 = sbr.rel (%p352) target = $region56
        $region55: #{tpu_custom_call.1} parent=51 // pred_region
          %s355 = sand.u32 %s141, 1
          %s356 = scalar_lea.sflag [#allocation4], %s355
          %s357 = sand.u32 %s141, 1
          %s358 = smul.addr %s357, 8
          %s359 = scalar_lea.vmem [#allocation5], %s358
          %361 = dma.done %s356, 128
        $region56: #{tpu_custom_call.1} parent=51 // pred_fallthru
          _
      $region52: #{tpu_custom_call.1} parent=5 // pred_fallthru
        _
    $region6: #{tpu_custom_call.1} parent=1 // loop_footer
      %s21 = sadd.s32 1, %s17
    $region7: #{tpu_custom_call.1} parent=1 // loop_footer_branch
      %16 = sbr.rel target = $region3
    $region8: #{tpu_custom_call.1} parent=1 // loop_exit
      _
    %362 = vsyncpa [#allocation3], 1
    %s363 = scalar_lea.sflag [#allocation3], 1
    %364 = vsyncpa %s363, 1
    %365 = vsyncpa [#allocation4], 1
    %s366 = scalar_lea.sflag [#allocation4], 1
    %367 = vsyncpa %s366, 1

</llo_original>
